<compile_context>
chip_gen: v5e
topology: v5e:2x2
jax: 0.10.0
libtpu: 0.0.40
codegen_flags: <defaults>
</compile_context>

<pallas_src>
import functools

import jax
import jax.numpy as jnp
from jax.experimental import pallas as pl
from jax.experimental.pallas import tpu as pltpu


# ------------------------------------------------------------------ helpers
def _vmem_limit(buffered_bytes, scratch_bytes):
    """Explicit scoped-VMEM budget: double-buffered blocks + scratch, 1.5x
    headroom for compiler temporaries, floored at the v5e default (16 MiB)
    and clamped to v7x physical VMEM (64 MiB per TensorCore)."""
    want = int((buffered_bytes + scratch_bytes) * 1.5) + (2 << 20)
    return max(min(want, 64 << 20), 16 << 20)


# ------------------------------------------------------------ stage 1 kernel
def in_proj_kernel(x_ref, w_ref, b_ref, f_ref, acc_ref):
    """1x1 input conv, tiled over (batch, T tiles, D tiles); D is reduction."""
    @pl.when(pl.program_id(2) == 0)
    def _():
        acc_ref[...] = jnp.zeros_like(acc_ref)

    acc_ref[...] += jnp.dot(x_ref[0], w_ref[...],
                            preferred_element_type=jnp.float32)

    @pl.when(pl.program_id(2) == pl.num_programs(2) - 1)
    def _():
        f_ref[0] = (acc_ref[...] + b_ref[...]).astype(f_ref.dtype)


# ------------------------------------------------------------ stage 2 kernel
def pg_stack_kernel(num_layers, pad,
                    f_in_ref, mw_ref, mb_ref, w_out_ref, b_out_ref,
                    out_ref, f_pad_ref, lhs_ref):
    T = f_in_ref.shape[1]
    F = mw_ref.shape[2]

    # Zero the halo rows once: they are never overwritten afterwards, so the
    # zeros (Conv1d zero padding) persist across all grid steps.
    @pl.when(pl.program_id(0) == 0)
    def _():
        f_pad_ref[:pad, :] = jnp.zeros((pad, F), f_pad_ref.dtype)
        f_pad_ref[pad + T:, :] = jnp.zeros((pad, F), f_pad_ref.dtype)

    # Residual / accumulation path stays f32; MXU operands are bf16.
    f = f_in_ref[0].astype(jnp.float32)                                 # (T, F)

    for i in range(num_layers):                                         # static unroll
        d1 = 2 ** (num_layers - 1 - i)
        d2 = 2 ** i

        f_bf = f.astype(jnp.bfloat16)
        f_pad_ref[pad:pad + T, :] = f_bf

        # Packed LHS (T, 5F): pay each tap's sublane shift once per layer.
        lhs_ref[:, 0 * F:1 * F] = f_pad_ref[pad - d1: pad - d1 + T, :]  # f[t - d1]
        lhs_ref[:, 1 * F:2 * F] = f_pad_ref[pad + d1: pad + d1 + T, :]  # f[t + d1]
        lhs_ref[:, 2 * F:3 * F] = f_pad_ref[pad - d2: pad - d2 + T, :]  # f[t - d2]
        lhs_ref[:, 3 * F:4 * F] = f_pad_ref[pad + d2: pad + d2 + T, :]  # f[t + d2]
        lhs_ref[:, 4 * F:5 * F] = f_bf                                  # f[t]

        # Merged dilated+fusion conv: a single K=5F MXU matmul, f32 accumulate.
        fused = jnp.dot(lhs_ref[...], mw_ref[i],
                        preferred_element_type=jnp.float32) + mb_ref[i]
        # ReLU, dropout = identity (eval), residual — all f32.
        f = jnp.maximum(fused, 0.0) + f

    # 1x1 output conv; lane-dense (C padded to 128) bf16 stores.
    out = jnp.dot(f.astype(jnp.bfloat16), w_out_ref[...],
                  preferred_element_type=jnp.float32) + b_out_ref[...]
    out_ref[0] = out.astype(out_ref.dtype)


# ------------------------------------------------------------------ wrapper
def prediction_generation(x_nct, p, num_layers):
    """x_nct: (N, dim, T) float32 (PyTorch layout) -> (N, num_classes, T)."""
    N, D, T = x_nct.shape
    L = num_layers
    F = p["in_w"].shape[0]
    C = p["out_w"].shape[0]
    C_pad = ((C + 127) // 128) * 128
    max_dil = 2 ** (L - 1)
    PAD = ((max_dil + 15) // 16) * 16        # bf16 sublane-packing friendly halo

    # ---- PyTorch-layout weights; fold the 1x1 fusion conv in f32 ----
    w_in = jnp.transpose(p["in_w"][:, :, 0]).astype(jnp.bfloat16)       # (D, F)
    b_in = p["in_b"][None, :].astype(jnp.float32)                        # (1, F)

    mw_layers, mb_layers = [], []
    for i in range(L):
        A = jnp.transpose(p["fu_w"][i][:, :F, 0])                        # d1 half
        B = jnp.transpose(p["fu_w"][i][:, F:, 0])                        # d2 half
        W1 = [jnp.transpose(p["d1_w"][i][:, :, k]) for k in range(3)]
        W2 = [jnp.transpose(p["d2_w"][i][:, :, k]) for k in range(3)]
        mw_layers.append(jnp.concatenate(
            [W1[0] @ A,              # tap f[t - d1]
             W1[2] @ A,              # tap f[t + d1]
             W2[0] @ B,              # tap f[t - d2]
             W2[2] @ B,              # tap f[t + d2]
             W1[1] @ A + W2[1] @ B,  # center tap (shared)
             ], axis=0))                                                  # (5F, F)
        mb_layers.append(p["d1_b"][i] @ A + p["d2_b"][i] @ B + p["fu_b"][i])
    mw = jnp.stack(mw_layers, 0).astype(jnp.bfloat16)                    # (L, 5F, F)
    mb = jnp.stack(mb_layers, 0)[:, None, :].astype(jnp.float32)         # (L, 1, F)

    w_out = jnp.transpose(p["out_w"][:, :, 0])
    w_out = jnp.pad(w_out, ((0, 0), (0, C_pad - C))).astype(jnp.bfloat16)  # (F, Cp)
    b_out = jnp.pad(p["out_b"], (0, C_pad - C))[None, :].astype(jnp.float32)

    # x cast to bf16 in the wrapper: halves input DMA / VMEM footprint.
    x_ntc = jnp.transpose(x_nct, (0, 2, 1)).astype(jnp.bfloat16)          # (N, T, D)

    # ------------------ stage 1: tiled 1x1 input projection ------------------
    tT = T if T <= 512 else 512
    tD = D if D <= 512 else 512
    assert T % tT == 0 and D % tD == 0, "demo sizes must divide the tiles"
    nT, nD = T // tT, D // tD

    s1_blocks = tT * tD * 2 + tD * F * 2 + F * 4 + tT * F * 2
    s1_limit = _vmem_limit(2 * s1_blocks, scratch_bytes=tT * F * 4)

    f_act = pl.pallas_call(
        in_proj_kernel,
        out_shape=jax.ShapeDtypeStruct((N, T, F), jnp.bfloat16),
        grid=(N, nT, nD),
        in_specs=[
            pl.BlockSpec((1, tT, tD), lambda b, t, d: (b, t, d)),
            pl.BlockSpec((tD, F), lambda b, t, d: (d, 0)),
            pl.BlockSpec((1, F), lambda b, t, d: (0, 0)),
        ],
        out_specs=pl.BlockSpec((1, tT, F), lambda b, t, d: (b, t, 0)),
        scratch_shapes=[pltpu.VMEM((tT, F), jnp.float32)],
        compiler_params=pltpu.CompilerParams(
            dimension_semantics=("parallel", "parallel", "arbitrary"),
            vmem_limit_bytes=s1_limit),
    )(x_ntc, w_in, b_in)

    # ------------------ stage 2: dilated stack + output conv -----------------
    def const_spec(a):
        nd = a.ndim
        return pl.BlockSpec(a.shape, lambda b, _nd=nd: (0,) * _nd)

    s2_blocks = (T * F * 2 + L * 5 * F * F * 2 + L * F * 4
                 + F * C_pad * 2 + C_pad * 4 + T * C_pad * 2)
    s2_scratch = ((T + 2 * PAD) * F * 2      # f_pad
                  + T * 5 * F * 2            # packed LHS
                  + 2 * T * F * 4)           # f / fused f32 temporaries
    s2_limit = _vmem_limit(2 * s2_blocks, scratch_bytes=s2_scratch)

    kernel = functools.partial(pg_stack_kernel, L, PAD)
    out = pl.pallas_call(
        kernel,
        out_shape=jax.ShapeDtypeStruct((N, T, C_pad), jnp.bfloat16),
        grid=(N,),
        in_specs=[
            pl.BlockSpec((1, T, F), lambda b: (b, 0, 0)),
            const_spec(mw), const_spec(mb),
            const_spec(w_out), const_spec(b_out),
        ],
        out_specs=pl.BlockSpec((1, T, C_pad), lambda b: (b, 0, 0)),
        scratch_shapes=[pltpu.VMEM((T + 2 * PAD, F), jnp.bfloat16),
                        pltpu.VMEM((T, 5 * F), jnp.bfloat16)],
        compiler_params=pltpu.CompilerParams(
            dimension_semantics=("parallel",),
            vmem_limit_bytes=s2_limit),
    )(f_act, mw, mb, w_out, b_out)

    # slice lane padding, upcast, back to PyTorch (N, C, T)
    return jnp.transpose(out[:, :, :C].astype(jnp.float32), (0, 2, 1))


# ------------------------------------------------------------------ reference
def _torch_conv1d(x, w, b, dilation=1, padding=0):
    # x: (N, Cin, T), w: (Cout, Cin, K), b: (Cout,)
    y = jax.lax.conv_general_dilated(
        x, w, window_strides=(1,), padding=[(padding, padding)],
        rhs_dilation=(dilation,),
        dimension_numbers=("NCH", "OIH", "NCH"))
    return y + b[None, :, None]


def prediction_generation_ref(x, p, num_layers):
    f = _torch_conv1d(x, p["in_w"], p["in_b"])
    for i in range(num_layers):
        d1 = 2 ** (num_layers - 1 - i)
        d2 = 2 ** i
        a = _torch_conv1d(f, p["d1_w"][i], p["d1_b"][i], dilation=d1, padding=d1)
        b = _torch_conv1d(f, p["d2_w"][i], p["d2_b"][i], dilation=d2, padding=d2)
        cat = jnp.concatenate([a, b], axis=1)
        fused = _torch_conv1d(cat, p["fu_w"][i], p["fu_b"][i])
        f = jax.nn.relu(fused) + f          # dropout = identity (eval mode)
    return _torch_conv1d(f, p["out_w"], p["out_b"])


# ------------------------------------------------------------------ params
def init_params(key, num_layers, num_f_maps, dim, num_classes):
    """Deterministic synthetic weights in the exact PyTorch Conv1d layouts."""
    ks = jax.random.split(key, 10)
    s = 0.1
    L, F, D, C = num_layers, num_f_maps, dim, num_classes
    return {
        "in_w":  s * jax.random.normal(ks[0], (F, D, 1), jnp.float32),
        "in_b":  s * jax.random.normal(ks[1], (F,), jnp.float32),
        "d1_w":  s * jax.random.normal(ks[2], (L, F, F, 3), jnp.float32),
        "d1_b":  s * jax.random.normal(ks[3], (L, F), jnp.float32),
        "d2_w":  s * jax.random.normal(ks[4], (L, F, F, 3), jnp.float32),
        "d2_b":  s * jax.random.normal(ks[5], (L, F), jnp.float32),
        "fu_w":  s * jax.random.normal(ks[6], (L, F, 2 * F, 1), jnp.float32),
        "fu_b":  s * jax.random.normal(ks[7], (L, F), jnp.float32),
        "out_w": s * jax.random.normal(ks[8], (C, F, 1), jnp.float32),
        "out_b": s * jax.random.normal(ks[9], (C,), jnp.float32),
    }


# ------------------------------------------------------------------ main
if __name__ == "__main__":
    num_layers = 4      # max dilation = 8
    num_f_maps = 32
    dim = 8
    num_classes = 10
    N, T = 2, 64

    key = jax.random.PRNGKey(0)
    kx, kp = jax.random.split(key)
    x = jax.random.normal(kx, (N, dim, T), jnp.float32)   # PyTorch NCW layout
    params = init_params(kp, num_layers, num_f_maps, dim, num_classes)

    out = jax.block_until_ready(prediction_generation(x, params, num_layers))
    ref = jax.block_until_ready(prediction_generation_ref(x, params, num_layers))

    assert out.shape == (N, num_classes, T)
    # bf16 MXU operands, bf16 inter-stage activations, folded fusion weights
    # and bf16 output storage change rounding/summation order vs the f32
    # reference => loosened tolerance.
    max_err = float(jnp.max(jnp.abs(out - ref)))
    assert jnp.allclose(out, ref, atol=7.5e-2, rtol=7.5e-2), \
        f"mismatch vs reference (max abs err {max_err})"

    print("KERNEL_OK")
</pallas_src>

<mosaic_0001>
module attributes {stable_mosaic.version = 11 : i64} {
  func.func @in_proj_kernel(%arg0: i32, %arg1: i32, %arg2: i32, %arg3: memref<1x64x8xbf16, #tpu.memory_space<vmem>>, %arg4: memref<8x32xbf16, #tpu.memory_space<vmem>>, %arg5: memref<1x32xf32, #tpu.memory_space<vmem>>, %arg6: memref<1x64x32xbf16, #tpu.memory_space<vmem>>, %arg7: memref<64x32xf32, #tpu.memory_space<vmem>>) attributes {dimension_semantics = [#tpu.dimension_semantics<parallel>, #tpu.dimension_semantics<parallel>, #tpu.dimension_semantics<arbitrary>], iteration_bounds = array<i64: 2, 1, 1>, scalar_prefetch = 0 : i64, scratch_operands = 1 : i64, tpu.core_type = #tpu.core_type<tc>, window_params = [{transform_indices = @transform_0, window_bounds = array<i64: 1, 64, 8>}, {transform_indices = @transform_1, window_bounds = array<i64: 8, 32>}, {pipeline_mode = #tpu.pipeline_mode<synchronous>, transform_indices = @transform_2, window_bounds = array<i64: 1, 32>}, {transform_indices = @transform_3, window_bounds = array<i64: 1, 64, 32>}]} {
    %c0_i32 = arith.constant 0 : i32
    %0 = arith.cmpi eq, %arg2, %c0_i32 : i32
    %1 = arith.extui %0 : i1 to i32
    %c0_i32_0 = arith.constant 0 : i32
    %2 = arith.cmpi ne, %1, %c0_i32_0 : i32
    scf.if %2 {
      %cst_11 = arith.constant 0.000000e+00 : f32
      %13 = vector.broadcast %cst_11 : f32 to vector<64x32xf32>
      %c0_12 = arith.constant 0 : index
      %c0_13 = arith.constant 0 : index
      %14 = vector.load %arg7[%c0_12, %c0_13] : memref<64x32xf32, #tpu.memory_space<vmem>>, vector<64x32xf32>
      tpu.vector_store %arg7[%c0_12, %c0_13], %13 {strides = array<i32>} : memref<64x32xf32, #tpu.memory_space<vmem>>, vector<64x32xf32>,
    } else {
    }
    %c0 = arith.constant 0 : index
    %c0_1 = arith.constant 0 : index
    %3 = vector.load %arg7[%c0, %c0_1] : memref<64x32xf32, #tpu.memory_space<vmem>>, vector<64x32xf32>
    %c0_2 = arith.constant 0 : index
    %c0_3 = arith.constant 0 : index
    %c0_4 = arith.constant 0 : index
    %4 = vector.load %arg3[%c0_2, %c0_3, %c0_4] : memref<1x64x8xbf16, #tpu.memory_space<vmem>>, vector<1x64x8xbf16>
    %5 = vector.shape_cast %4 : vector<1x64x8xbf16> to vector<64x8xbf16>
    %c0_5 = arith.constant 0 : index
    %c0_6 = arith.constant 0 : index
    %6 = vector.load %arg4[%c0_5, %c0_6] : memref<8x32xbf16, #tpu.memory_space<vmem>>, vector<8x32xbf16>
    %cst = arith.constant dense<0.000000e+00> : vector<64x32xf32>
    %7 = tpu.matmul %5, %6, %cst {dimension_numbers = #tpu.dot_dimension_numbers<[1], [0], [0], [1], [0, 0, 1, 1], [], []>} : vector<64x8xbf16>, vector<8x32xbf16>, vector<64x32xf32> -> vector<64x32xf32>
    %8 = arith.addf %3, %7 : vector<64x32xf32>
    %c0_7 = arith.constant 0 : index
    %c0_8 = arith.constant 0 : index
    %9 = vector.load %arg7[%c0_7, %c0_8] : memref<64x32xf32, #tpu.memory_space<vmem>>, vector<64x32xf32>
    tpu.vector_store %arg7[%c0_7, %c0_8], %8 {strides = array<i32>} : memref<64x32xf32, #tpu.memory_space<vmem>>, vector<64x32xf32>,
    %c0_i32_9 = arith.constant 0 : i32
    %10 = arith.cmpi eq, %arg2, %c0_i32_9 : i32
    %11 = arith.extui %10 : i1 to i32
    %c0_i32_10 = arith.constant 0 : i32
    %12 = arith.cmpi ne, %11, %c0_i32_10 : i32
    scf.if %12 {
      %c0_11 = arith.constant 0 : index
      %c0_12 = arith.constant 0 : index
      %13 = vector.load %arg7[%c0_11, %c0_12] : memref<64x32xf32, #tpu.memory_space<vmem>>, vector<64x32xf32>
      %c0_13 = arith.constant 0 : index
      %c0_14 = arith.constant 0 : index
      %14 = vector.load %arg5[%c0_13, %c0_14] : memref<1x32xf32, #tpu.memory_space<vmem>>, vector<1x32xf32>
      %15 = vector.broadcast %14 : vector<1x32xf32> to vector<64x32xf32>
      %16 = arith.addf %13, %15 : vector<64x32xf32>
      %17 = arith.truncf %16 : vector<64x32xf32> to vector<64x32xbf16>
      %c0_15 = arith.constant 0 : index
      %c0_16 = arith.constant 0 : index
      %c0_17 = arith.constant 0 : index
      %18 = vector.load %arg6[%c0_15, %c0_16, %c0_17] : memref<1x64x32xbf16, #tpu.memory_space<vmem>>, vector<1x64x32xbf16>
      %19 = vector.shape_cast %18 : vector<1x64x32xbf16> to vector<64x32xbf16>
      %20 = vector.shape_cast %17 : vector<64x32xbf16> to vector<1x64x32xbf16>
      tpu.vector_store %arg6[%c0_15, %c0_16, %c0_17], %20 {strides = array<i32>} : memref<1x64x32xbf16, #tpu.memory_space<vmem>>, vector<1x64x32xbf16>,
    } else {
    }
    return
  }
  func.func @transform_0(%arg0: i32, %arg1: i32, %arg2: i32) -> (i32, i32, i32) {
    %c0_i32 = arith.constant 0 : i32
    return %arg0, %arg1, %arg2 : i32, i32, i32
  }
  func.func @transform_1(%arg0: i32, %arg1: i32, %arg2: i32) -> (i32, i32) {
    %c0_i32 = arith.constant 0 : i32
    %c0_i32_0 = arith.constant 0 : i32
    return %arg2, %c0_i32 : i32, i32
  }
  func.func @transform_2(%arg0: i32, %arg1: i32, %arg2: i32) -> (i32, i32) {
    %c0_i32 = arith.constant 0 : i32
    %c0_i32_0 = arith.constant 0 : i32
    %c0_i32_1 = arith.constant 0 : i32
    return %c0_i32, %c0_i32_0 : i32, i32
  }
  func.func @transform_3(%arg0: i32, %arg1: i32, %arg2: i32) -> (i32, i32, i32) {
    %c0_i32 = arith.constant 0 : i32
    %c0_i32_0 = arith.constant 0 : i32
    return %arg0, %arg1, %c0_i32 : i32, i32, i32
  }
}

</mosaic_0001>

<llo_original>
// kernel: tpu_custom_call.1
$region0: #{tpu_custom_call.1}
  #allocation0 [shape = 'u32[]', space=smem, size = 0x4, offset = 0x4, fixed_abs, tag = 'smem constant byte address 0x4 - core index']
  #allocation1 [shape = 'u32[72,128]{1,0:T(1,128)}', space=vmem, size = 0x9000, scoped, tag = 'internal scratch']
  #allocation2 [shape = 'f32[64,32]{1,0:T(8,128)}', space=vmem, size = 0x8000, scoped, tag = 'scratch operand']
  %s0 = inlined_call_operand.vmem [shape: bf16[2,64,8], index: 0, kind: input, shape index: {}]
  %s1 = inlined_call_operand.vmem [shape: bf16[8,32], index: 1, kind: input, shape index: {}]
  %s2 = inlined_call_operand.vmem [shape: f32[1,32], index: 2, kind: input, shape index: {}]
  %s3 = inlined_call_operand.vmem [shape: bf16[2,64,32], index: 3, kind: output, shape index: {}]
  %s4 = sld [smem:[#allocation0]]
  $region53: #{tpu_custom_call.1} parent=0
    _
  %s6 = ssub.s32 1, %s4
  %s7 = scalar_select 0, %s6, %s4
  loop: start=0, step=1, limit=4
  $region2: #{tpu_custom_call.1} parent=0 // loop_pre_header
    _
  $region3: #{tpu_custom_call.1} parent=0 // loop_header
    %s9 = sphi 0, %s13
    %p10 = scmp.ge.s32.totalorder %s9, 4
    %s16 = sphi 0, %s35
    %s17 = sphi 0, %s31
    %s18 = sphi 0, %s27
    %s19 = sphi 0, %s16
    %s20 = sphi 0, %s17
    %s21 = sphi 0, %s18
    %s22 = sphi 0, %s19
    %s23 = sphi 0, %s20
    %s24 = sphi 0, %s21
    %s42 = sphi 0, %s44
    %s45 = sphi 0, %s42
    %s46 = sphi 0, %s45
    %s62 = sphi 0, %s46
    %s68 = sphi 0, %s70
    %s71 = sphi 0, %s68
    %s72 = sphi 0, %s71
    %s88 = sphi 0, %s72
    %s92 = sphi 0, %s92
    %s94 = sphi 0, %s92
    %s95 = sphi 0, %s94
    %s109 = sphi 0, %s95
    %s117 = sphi 0, %s119
    %s120 = sphi 0, %s117
    %s121 = sphi 0, %s120
    %s137 = sphi 0, %s121
  $region4: #{tpu_custom_call.1} parent=0 // loop_header_branch
    %12 = sbr.rel (%p10) target = $region8
  $region5: #{tpu_custom_call.1} parent=0 // loop_body
    %s14 = ssub.s32 %s9, 1
    %s15 = ssub.s32 %s9, 2
    %s25 = sadd.s32 1, %s18
    %p26 = scmp.ge.s32.totalorder %s25, 1
    %s27 = scalar_select %p26, 0, %s25
    %s28 = sadd.s32 1, %s17
    %s29 = scalar_select %p26, %s28, %s17
    %p30 = scmp.ge.s32.totalorder %s29, 1
    %s31 = scalar_select %p30, 0, %s29
    %s32 = sadd.s32 1, %s16
    %s33 = scalar_select %p30, %s32, %s16
    %p34 = scmp.ge.s32.totalorder %s33, 2
    %s35 = scalar_select %p34, 0, %s33
    %s36 = ssub.s32 %s16, %s35
    %s37 = ssub.s32 %s17, %s31
    %s38 = sor.u32 %s36, %s37
    %s39 = ssub.s32 %s18, %s27
    %s40 = sor.u32 %s38, %s39
    %p41 = scmp.eq.s32.totalorder %s40, 0
    %s43 = sadd.s32 %s42, 1
    %s44 = scalar_select %p41, %s42, %s43
    %p47 = pneg %p41
    %p48 = scmp.eq.s32.totalorder %s9, 1
    %p49 = por %p47, %p48
    %p50 = scmp.ne.s32.totalorder %s42, %s45
    %p51 = scmp.eq.s32.totalorder %s9, 0
    %p52 = por %p50, %p51
    %p53 = scmp.ne.s32.totalorder %s42, %s45
    %p54 = scmp.eq.s32.totalorder %s14, 1
    %p55 = por %p53, %p54
    %p56 = scmp.ne.s32.totalorder %s45, %s46
    %p57 = scmp.eq.s32.totalorder %s14, 0
    %p58 = por %p56, %p57
    %p59 = scmp.ne.s32.totalorder %s45, %s46
    %p60 = scmp.eq.s32.totalorder %s15, 1
    %p61 = por %p59, %p60
    %p63 = scmp.ne.s32.totalorder %s46, %s62
    %p64 = scmp.eq.s32.totalorder %s15, 0
    %p65 = por %p63, %p64
    %s66 = ssub.s32 %s18, %s27
    %p67 = scmp.eq.s32.totalorder %s66, 0
    %s69 = sadd.s32 %s68, 1
    %s70 = scalar_select %p67, %s68, %s69
    %p73 = pneg %p67
    %p74 = scmp.eq.s32.totalorder %s9, 1
    %p75 = por %p73, %p74
    %p76 = scmp.ne.s32.totalorder %s68, %s71
    %p77 = scmp.eq.s32.totalorder %s9, 0
    %p78 = por %p76, %p77
    %p79 = scmp.ne.s32.totalorder %s68, %s71
    %p80 = scmp.eq.s32.totalorder %s14, 1
    %p81 = por %p79, %p80
    %p82 = scmp.ne.s32.totalorder %s71, %s72
    %p83 = scmp.eq.s32.totalorder %s14, 0
    %p84 = por %p82, %p83
    %p85 = scmp.ne.s32.totalorder %s71, %s72
    %p86 = scmp.eq.s32.totalorder %s15, 1
    %p87 = por %p85, %p86
    %p89 = scmp.ne.s32.totalorder %s72, %s88
    %p90 = scmp.eq.s32.totalorder %s15, 0
    %p91 = por %p89, %p90
    %s93 = sadd.s32 %s92, 1
    %p96 = scmp.eq.s32.totalorder %s9, 1
    %p97 = scmp.ne.s32.totalorder %s92, %s94
    %p98 = scmp.eq.s32.totalorder %s9, 0
    %p99 = por %p97, %p98
    %p100 = scmp.ne.s32.totalorder %s92, %s94
    %p101 = scmp.eq.s32.totalorder %s14, 1
    %p102 = por %p100, %p101
    %p103 = scmp.ne.s32.totalorder %s94, %s95
    %p104 = scmp.eq.s32.totalorder %s14, 0
    %p105 = por %p103, %p104
    %p106 = scmp.ne.s32.totalorder %s94, %s95
    %p107 = scmp.eq.s32.totalorder %s15, 1
    %p108 = por %p106, %p107
    %p110 = scmp.ne.s32.totalorder %s95, %s109
    %p111 = scmp.eq.s32.totalorder %s15, 0
    %p112 = por %p110, %p111
    %s113 = ssub.s32 %s16, %s35
    %s114 = ssub.s32 %s17, %s31
    %s115 = sor.u32 %s113, %s114
    %p116 = scmp.eq.s32.totalorder %s115, 0
    %s118 = sadd.s32 %s117, 1
    %s119 = scalar_select %p116, %s117, %s118
    %p122 = pneg %p116
    %p123 = scmp.eq.s32.totalorder %s9, 1
    %p124 = por %p122, %p123
    %p125 = scmp.ne.s32.totalorder %s117, %s120
    %p126 = scmp.eq.s32.totalorder %s9, 0
    %p127 = por %p125, %p126
    %p128 = scmp.ne.s32.totalorder %s117, %s120
    %p129 = scmp.eq.s32.totalorder %s14, 1
    %p130 = por %p128, %p129
    %p131 = scmp.ne.s32.totalorder %s120, %s121
    %p132 = scmp.eq.s32.totalorder %s14, 0
    %p133 = por %p131, %p132
    %p134 = scmp.ne.s32.totalorder %s120, %s121
    %p135 = scmp.eq.s32.totalorder %s15, 1
    %p136 = por %p134, %p135
    %p138 = scmp.ne.s32.totalorder %s121, %s137
    %p139 = scmp.eq.s32.totalorder %s15, 0
    %p140 = por %p138, %p139
    %p141 = scmp.le.s32.totalorder 1, %s9
    %p142 = scmp.lt.s32.totalorder %s9, 3
    %p143 = pnand %p141, %p142
    %p144 = pneg %p143
    // Predicated region
    $region9: #{tpu_custom_call.1} parent=5 // pred_check
      _
    $region10: #{tpu_custom_call.1} parent=5 // pred_check_branch
      %146 = sbr.rel (%p143) target = $region12
    $region11: #{tpu_custom_call.1} parent=5 // pred_region
      %s147 = ssub.s32 %s9, 1
      // Predicated region
      $region13: #{tpu_custom_call.1} parent=11 // pred_check
        %p148 = pneg %p84
      $region14: #{tpu_custom_call.1} parent=11 // pred_check_branch
        %150 = sbr.rel (%p148) target = $region16
      $region15: #{tpu_custom_call.1} parent=11 // pred_region
        %p151 = scmp.lt.s32.totalorder %s21, 0
        %s152 = scalar_select %p151, %s21, 0
        %s153 = smul.addr %s152, 4
        %s154 = scalar_lea.vmem %s1, %s153
      $region16: #{tpu_custom_call.1} parent=11 // pred_fallthru
        _
      // Predicated region
      $region17: #{tpu_custom_call.1} parent=11 // pred_check
        %p155 = pneg %p105
      $region18: #{tpu_custom_call.1} parent=11 // pred_check_branch
        %157 = sbr.rel (%p155) target = $region20
      $region19: #{tpu_custom_call.1} parent=11 // pred_region
        _
      $region20: #{tpu_custom_call.1} parent=11 // pred_fallthru
        _
    $region12: #{tpu_custom_call.1} parent=5 // pred_fallthru
      _
    %p158 = scmp.lt.s32.totalorder %s9, 2
    // Predicated region
    $region21: #{tpu_custom_call.1} parent=5 // pred_check
      %p159 = pneg %p158
    $region22: #{tpu_custom_call.1} parent=5 // pred_check_branch
      %161 = sbr.rel (%p159) target = $region24
    $region23: #{tpu_custom_call.1} parent=5 // pred_region
      // Predicated region
      $region25: #{tpu_custom_call.1} parent=23 // pred_check
        %p162 = pneg %p52
      $region26: #{tpu_custom_call.1} parent=23 // pred_check_branch
        %164 = sbr.rel (%p162) target = $region28
      $region27: #{tpu_custom_call.1} parent=23 // pred_region
        %s165 = smul.u32 8, %s17
        %p166 = scmp.lt.s32.totalorder %s16, 1
        %s167 = scalar_select %p166, %s16, 1
        %p168 = scmp.lt.s32.totalorder %s165, 7
        %s169 = scalar_select %p168, %s165, 7
        %p170 = scmp.lt.s32.totalorder %s18, 0
        %s171 = scalar_select %p170, %s18, 0
        %s172 = sadd.s32 %s171, %s169
        %s173 = smul.addr %s167, 8
        %s174 = sadd.s32 %s172, %s173
        %s175 = smul.addr %s174, 4
        %s176 = scalar_lea.vmem %s0, %s175
        %s177 = smul.u32 8, %s17
      $region28: #{tpu_custom_call.1} parent=23 // pred_fallthru
        _
    $region24: #{tpu_custom_call.1} parent=5 // pred_fallthru
      _
    %p178 = scmp.le.s32.totalorder 1, %s9
    %p179 = scmp.lt.s32.totalorder %s9, 3
    %p180 = pnand %p178, %p179
    %p181 = pneg %p180
    // Predicated region
    $region29: #{tpu_custom_call.1} parent=5 // pred_check
      _
    $region30: #{tpu_custom_call.1} parent=5 // pred_check_branch
      %183 = sbr.rel (%p180) target = $region32
    $region31: #{tpu_custom_call.1} parent=5 // pred_region
      %s184 = ssub.s32 %s9, 1
      %s185 = smul.u32 8, %s20
      %p186 = scmp.lt.s32.totalorder %s19, 1
      %s187 = scalar_select %p186, %s19, 1
      %p188 = scmp.lt.s32.totalorder %s185, 7
      %s189 = scalar_select %p188, %s185, 7
      %p190 = scmp.lt.s32.totalorder %s21, 0
      %s191 = scalar_select %p190, %s21, 0
      %s192 = sadd.s32 %s191, %s189
      %s193 = smul.addr %s187, 8
      %s194 = sadd.s32 %s192, %s193
      %s195 = smul.addr %s194, 4
      %s196 = scalar_lea.vmem %s0, %s195
      %p197 = pneg %p58
      %p198 = pneg %p55
      %p199 = scmp.lt.s32.totalorder %s21, 0
      %s200 = scalar_select %p199, %s21, 0
      %s201 = smul.addr %s200, 4
      %s202 = scalar_lea.vmem %s1, %s201
      %p203 = pneg %p84
      %p204 = pneg %p81
      %p205 = pneg %p105
      %p206 = pneg %p102
      %p207 = pneg %p133
      %p208 = pneg %p130
      %s209 = smul.u32 8, %s20
      %p210 = scmp.lt.s32.totalorder %s19, 1
      %s211 = scalar_select %p210, %s19, 1
      %p212 = scmp.lt.s32.totalorder %s209, 7
      %s213 = scalar_select %p212, %s209, 7
      %s214 = smul.addr %s211, 8
      %s215 = sadd.s32 %s213, %s214
      %s216 = smul.addr %s215, 4
      %s217 = scalar_lea.vmem %s3, %s216
      %s218 = smul.u32 8, %s20
      %p219 = scmp.lt.s32.totalorder %s19, 1
      %s220 = scalar_select %p219, %s19, 1
      %p221 = scmp.lt.s32.totalorder %s218, 7
      %s222 = scalar_select %p221, %s218, 7
      %p223 = scmp.lt.s32.totalorder %s21, 0
      %s224 = scalar_select %p223, %s21, 0
      %s225 = sadd.s32 %s224, %s222
      %s226 = smul.addr %s220, 8
      %s227 = sadd.s32 %s225, %s226
      %s228 = smul.addr %s227, 4
      %s229 = scalar_lea.vmem %s0, %s228
      %s230 = smul.u32 8, %s20
      %p231 = scmp.lt.s32.totalorder %s21, 0
      %s232 = scalar_select %p231, %s21, 0
      %s233 = smul.addr %s232, 4
      %s234 = scalar_lea.vmem %s1, %s233
      %s235 = smul.u32 8, %s20
      %p236 = scmp.lt.s32.totalorder %s19, 1
      %s237 = scalar_select %p236, %s19, 1
      %p238 = scmp.lt.s32.totalorder %s235, 7
      %s239 = scalar_select %p238, %s235, 7
      %s240 = smul.addr %s237, 8
      %s241 = sadd.s32 %s239, %s240
      %s242 = smul.addr %s241, 4
      %s243 = scalar_lea.vmem %s3, %s242
      %s244 = smul.u32 8, %s20
      %p246 = scmp.eq.s32.totalorder %s21, 0
      // Predicated region
      $region33: #{tpu_custom_call.1} parent=31 // pred_check
        %p247 = pneg %p246
      $region34: #{tpu_custom_call.1} parent=31 // pred_check_branch
        %249 = sbr.rel (%p247) target = $region36
      $region35: #{tpu_custom_call.1} parent=31 // pred_region
        %vm250 = vcmask 261120
        %251 = vst.msk [vmem:[#allocation2] sm:$0xff] %vm250, 0.0
        %252 = vst.msk [vmem:[#allocation2 + $0x8] sm:$0xff] %vm250, 0.0
        %253 = vst.msk [vmem:[#allocation2 + $0x10] sm:$0xff] %vm250, 0.0
        %254 = vst.msk [vmem:[#allocation2 + $0x18] sm:$0xff] %vm250, 0.0
        %255 = vst.msk [vmem:[#allocation2 + $0x20] sm:$0xff] %vm250, 0.0
        %256 = vst.msk [vmem:[#allocation2 + $0x28] sm:$0xff] %vm250, 0.0
        %257 = vst.msk [vmem:[#allocation2 + $0x30] sm:$0xff] %vm250, 0.0
        %258 = vst.msk [vmem:[#allocation2 + $0x38] sm:$0xff] %vm250, 0.0
      $region36: #{tpu_custom_call.1} parent=31 // pred_fallthru
        _
      %v259 = vld [vmem:[#allocation2] sm:$0xff]
      %v260 = vld [vmem:[#allocation2 + $0x8] sm:$0xff]
      %v261 = vld [vmem:[#allocation2 + $0x10] sm:$0xff]
      %v262 = vld [vmem:[#allocation2 + $0x18] sm:$0xff]
      %v263 = vld [vmem:[#allocation2 + $0x20] sm:$0xff]
      %v264 = vld [vmem:[#allocation2 + $0x28] sm:$0xff]
      %v265 = vld [vmem:[#allocation2 + $0x30] sm:$0xff]
      %v266 = vld [vmem:[#allocation2 + $0x38] sm:$0xff]
      %v267 = vld [vmem:[%s229] sm:$0xf]
      %v268 = vld [vmem:[%s229 + $0x4] sm:$0xf]
      %v269 = vld [vmem:[%s229 + $0x8] sm:$0xf]
      %v270 = vld [vmem:[%s229 + $0xc] sm:$0xf]
      %v271 = vld [vmem:[%s229 + $0x10] sm:$0xf]
      %v272 = vld [vmem:[%s229 + $0x14] sm:$0xf]
      %v273 = vld [vmem:[%s229 + $0x18] sm:$0xf]
      %v274 = vld [vmem:[%s229 + $0x1c] sm:$0xf]
      %v275 = vld [vmem:[%s234] sm:$0xf]
      %v284 = vunpack.c.l.b16 %v267
      %v285 = vunpack.c.l.b16 %v268
      %v286 = vunpack.c.l.b16 %v269
      %v287 = vunpack.c.l.b16 %v270
      %v288 = vunpack.c.l.b16 %v271
      %v289 = vunpack.c.l.b16 %v272
      %v290 = vunpack.c.l.b16 %v273
      %v291 = vunpack.c.l.b16 %v274
      %v292 = vpack.c.b16 %v285, %v284
      %v293 = vpack.c.b16 %v287, %v286
      %v294 = vpack.c.b16 %v289, %v288
      %v295 = vpack.c.b16 %v291, %v290
      %vm296 = vcmask 64512
      %v298 = vsel %vm296, %v292, 0
      %v301 = vsel %vm296, %v293, 0
      %v304 = vsel %vm296, %v294, 0
      %v307 = vsel %vm296, %v295, 0
      %vm309 = vcmask 1043456
      %v311 = vsel %vm309, %v275, 0
      %313 = vmatpush.bf16.msra.mxu0 0
      %314 = vmatpush.bf16.msra.mxu0 0
      %315 = vmatpush.bf16.msra.mxu0 0
      %316 = vmatpush.bf16.msra.mxu0 0
      %317 = vmatpush.bf16.msra.mxu0 0
      %318 = vmatpush.bf16.msra.mxu0 0
      %319 = vmatpush.bf16.msra.mxu0 0
      %320 = vmatpush.bf16.msra.mxu0 %v311
      %321 = vmatmul.bf16.gmra.mxu0 %v298
      %v322 = vpop.f32.mrf.mxu0
      %v323 = vadd.f32 0.0, %v322
      %v324 = vpop.f32.mrf.mxu0
      %v325 = vadd.f32 0.0, %v324
      %326 = vmatmul.bf16.gmra.mxu0 %v301
      %v327 = vpop.f32.mrf.mxu0
      %v328 = vadd.f32 0.0, %v327
      %v329 = vpop.f32.mrf.mxu0
      %v330 = vadd.f32 0.0, %v329
      %331 = vmatmul.bf16.gmra.mxu0 %v304
      %v332 = vpop.f32.mrf.mxu0
      %v333 = vadd.f32 0.0, %v332
      %v334 = vpop.f32.mrf.mxu0
      %v335 = vadd.f32 0.0, %v334
      %336 = vmatmul.bf16.gmra.mxu0 %v307
      %v337 = vpop.f32.mrf.mxu0
      %v338 = vadd.f32 0.0, %v337
      %v339 = vpop.f32.mrf.mxu0
      %v340 = vadd.f32 0.0, %v339
      %341 = vdwg.mxu0
      %v342 = vadd.f32 %v259, %v323
      %v343 = vadd.f32 %v260, %v325
      %v344 = vadd.f32 %v261, %v328
      %v345 = vadd.f32 %v262, %v330
      %v346 = vadd.f32 %v263, %v333
      %v347 = vadd.f32 %v264, %v335
      %v348 = vadd.f32 %v265, %v338
      %v349 = vadd.f32 %v266, %v340
      %vm350 = vcmask 261120
      %351 = vst.msk [vmem:[#allocation2] sm:$0xff] %vm350, %v342
      %352 = vst.msk [vmem:[#allocation2 + $0x8] sm:$0xff] %vm350, %v343
      %353 = vst.msk [vmem:[#allocation2 + $0x10] sm:$0xff] %vm350, %v344
      %354 = vst.msk [vmem:[#allocation2 + $0x18] sm:$0xff] %vm350, %v345
      %355 = vst.msk [vmem:[#allocation2 + $0x20] sm:$0xff] %vm350, %v346
      %356 = vst.msk [vmem:[#allocation2 + $0x28] sm:$0xff] %vm350, %v347
      %357 = vst.msk [vmem:[#allocation2 + $0x30] sm:$0xff] %vm350, %v348
      %358 = vst.msk [vmem:[#allocation2 + $0x38] sm:$0xff] %vm350, %v349
      // Predicated region
      $region37: #{tpu_custom_call.1} parent=31 // pred_check
        %p359 = pneg %p246
      $region38: #{tpu_custom_call.1} parent=31 // pred_check_branch
        %361 = sbr.rel (%p359) target = $region40
      $region39: #{tpu_custom_call.1} parent=31 // pred_region
        %v362 = vld [vmem:[#allocation2] sm:$0xff]
        %v363 = vld [vmem:[#allocation2 + $0x8] sm:$0xff]
        %v364 = vld [vmem:[#allocation2 + $0x10] sm:$0xff]
        %v365 = vld [vmem:[#allocation2 + $0x18] sm:$0xff]
        %v366 = vld [vmem:[#allocation2 + $0x20] sm:$0xff]
        %v367 = vld [vmem:[#allocation2 + $0x28] sm:$0xff]
        %v368 = vld [vmem:[#allocation2 + $0x30] sm:$0xff]
        %v369 = vld [vmem:[#allocation2 + $0x38] sm:$0xff]
        %v370 = vld [vmem:[%s2] sm:$0x1]
        %v372 = vperm.slane %v370, 0
        %v374 = vadd.f32 %v362, %v372
        %v375 = vadd.f32 %v363, %v372
        %v376 = vadd.f32 %v364, %v372
        %v377 = vadd.f32 %v365, %v372
        %v378 = vadd.f32 %v366, %v372
        %v379 = vadd.f32 %v367, %v372
        %v380 = vadd.f32 %v368, %v372
        %v381 = vadd.f32 %v369, %v372
        %v382 = vpack.c.bf16 %v374, %v374
        %v383 = vpack.c.bf16 %v375, %v375
        %v384 = vpack.c.bf16 %v376, %v376
        %v385 = vpack.c.bf16 %v377, %v377
        %v386 = vpack.c.bf16 %v378, %v378
        %v387 = vpack.c.bf16 %v379, %v379
        %v388 = vpack.c.bf16 %v380, %v380
        %v389 = vpack.c.bf16 %v381, %v381
        %vm390 = vcmask 257024
        %391 = vst.msk [vmem:[%s243] sm:$0xf] %vm390, %v382
        %392 = vst.msk [vmem:[%s243 + $0x4] sm:$0xf] %vm390, %v383
        %393 = vst.msk [vmem:[%s243 + $0x8] sm:$0xf] %vm390, %v384
        %394 = vst.msk [vmem:[%s243 + $0xc] sm:$0xf] %vm390, %v385
        %395 = vst.msk [vmem:[%s243 + $0x10] sm:$0xf] %vm390, %v386
        %396 = vst.msk [vmem:[%s243 + $0x14] sm:$0xf] %vm390, %v387
        %397 = vst.msk [vmem:[%s243 + $0x18] sm:$0xf] %vm390, %v388
        %398 = vst.msk [vmem:[%s243 + $0x1c] sm:$0xf] %vm390, %v389
      $region40: #{tpu_custom_call.1} parent=31 // pred_fallthru
        _
      %s399 = smul.u32 8, %s20
      %p400 = scmp.lt.s32.totalorder %s19, 1
      %s401 = scalar_select %p400, %s19, 1
      %p402 = scmp.lt.s32.totalorder %s399, 7
      %s403 = scalar_select %p402, %s399, 7
      %s404 = smul.addr %s401, 8
      %s405 = sadd.s32 %s403, %s404
      %s406 = smul.addr %s405, 4
      %s407 = scalar_lea.vmem %s3, %s406
      // Predicated region
      $region41: #{tpu_custom_call.1} parent=31 // pred_check
        %p408 = pneg %p130
      $region42: #{tpu_custom_call.1} parent=31 // pred_check_branch
        %410 = sbr.rel (%p408) target = $region44
      $region43: #{tpu_custom_call.1} parent=31 // pred_region
        %s411 = smul.u32 8, %s20
      $region44: #{tpu_custom_call.1} parent=31 // pred_fallthru
        _
    $region32: #{tpu_custom_call.1} parent=5 // pred_fallthru
      _
    %p412 = scmp.le.s32.totalorder 2, %s9
    // Predicated region
    $region45: #{tpu_custom_call.1} parent=5 // pred_check
      %p413 = pneg %p412
    $region46: #{tpu_custom_call.1} parent=5 // pred_check_branch
      %415 = sbr.rel (%p413) target = $region48
    $region47: #{tpu_custom_call.1} parent=5 // pred_region
      %s416 = ssub.s32 %s9, 2
      // Predicated region
      $region49: #{tpu_custom_call.1} parent=47 // pred_check
        %p417 = pneg %p136
      $region50: #{tpu_custom_call.1} parent=47 // pred_check_branch
        %419 = sbr.rel (%p417) target = $region52
      $region51: #{tpu_custom_call.1} parent=47 // pred_region
        %s420 = smul.u32 8, %s23
        %p421 = scmp.lt.s32.totalorder %s22, 1
        %s422 = scalar_select %p421, %s22, 1
        %p423 = scmp.lt.s32.totalorder %s420, 7
        %s424 = scalar_select %p423, %s420, 7
        %s425 = smul.addr %s422, 8
        %s426 = sadd.s32 %s424, %s425
        %s427 = smul.addr %s426, 4
        %s428 = scalar_lea.vmem %s3, %s427
      $region52: #{tpu_custom_call.1} parent=47 // pred_fallthru
        _
    $region48: #{tpu_custom_call.1} parent=5 // pred_fallthru
      _
  $region6: #{tpu_custom_call.1} parent=0 // loop_footer
    %s13 = sadd.s32 1, %s9
  $region7: #{tpu_custom_call.1} parent=0 // loop_footer_branch
    %8 = sbr.rel target = $region3
  $region8: #{tpu_custom_call.1} parent=0 // loop_exit
    _

</llo_original>
